<compile_context>
chip_gen: v7x
topology: tpu7x:2x2x1
jax: 0.10.0
libtpu: 0.0.40
codegen_flags: <defaults>
</compile_context>

<pallas_src>
from functools import partial

import jax
import jax.numpy as jnp
import numpy as np
from jax.experimental import pallas as pl
from jax.experimental.pallas import tpu as pltpu

BN_EPS = 1e-5


def _ceil_to(x, m):
    return ((x + m - 1) // m) * m


def _reduce_conv_bn_relu_kernel(x_ref, w_ref, b_ref, y_ref, acc_ref, *, inv_hw):
    """Pass 1: per-channel spatial sum -> mean -> BN-folded 1x1 conv + bias + ReLU.

    x_ref:   (1, C_in, T_HW)  one HW tile of one batch element
    w_ref:   (C_out, C_in)    BN-folded conv weight (block index constant -> resident)
    b_ref:   (C_out, 1)       BN-folded bias        (resident)
    y_ref:   (1, C_out, 1)    per-batch pooled/activated result
    acc_ref: (C_in, 1)        VMEM scratch: running per-channel sum
    """
    hw_i = pl.program_id(1)

    @pl.when(hw_i == 0)
    def _init():
        acc_ref[...] = jnp.zeros_like(acc_ref)

    x = x_ref[0].astype(jnp.float32)                        # (C_in, T_HW)
    acc_ref[...] += jnp.sum(x, axis=-1, keepdims=True)      # (C_in, 1)

    @pl.when(hw_i == pl.num_programs(1) - 1)
    def _finalize():
        mean = acc_ref[...] * inv_hw                        # (C_in, 1), true-HW divide once
        y = jnp.dot(w_ref[...], mean,
                    preferred_element_type=jnp.float32)     # (C_out, 1)
        y = jnp.maximum(y + b_ref[...], 0.0)                # BN (folded) + ReLU
        y_ref[0] = y.astype(y_ref.dtype)


def _broadcast_kernel(y_ref, o_ref):
    """Pass 2: broadcast the (C_out, 1) pooled value over a lane-dense HW tile."""
    c_out, t_hw = o_ref.shape[1], o_ref.shape[2]
    o_ref[0] = jnp.broadcast_to(y_ref[0], (c_out, t_hw)).astype(o_ref.dtype)


def aspp_pooling(x_nchw, weight, gamma, beta, running_mean, running_var,
                 eps=BN_EPS):
    """x_nchw: (N, C_in, H, W) f32; weight: (C_out, C_in). Returns (N, C_out, H, W) f32."""
    N, C_in, H, W = x_nchw.shape
    C_out = weight.shape[0]
    HW = H * W

    # ---- Fold BatchNorm (inference) into the 1x1 conv: w' = scale*W, b' = beta - mu*scale.
    scale = gamma.astype(jnp.float32) * jax.lax.rsqrt(
        running_var.astype(jnp.float32) + eps)                        # (C_out,)
    w_folded = weight.astype(jnp.float32) * scale[:, None]            # (C_out, C_in)
    b_folded = (beta.astype(jnp.float32)
                - running_mean.astype(jnp.float32) * scale).reshape(C_out, 1)

    # ---- Spatial tiling: lane-dense (multiple of 128) tiles sized so the
    #      double-buffered input tile stays <= ~16 MiB (safe on v7x's 64 MiB VMEM).
    bytes_per_in_row = 4 * max(C_in, 1)
    t_cap = max(128, ((8 * 1024 * 1024) // bytes_per_in_row) // 128 * 128)
    T_HW = int(min(2048, _ceil_to(HW, 128), t_cap))
    HW_pad = _ceil_to(HW, T_HW)
    n_hw = HW_pad // T_HW

    x_flat = x_nchw.reshape(N, C_in, HW)
    if HW_pad != HW:
        # Zero padding does not change the spatial SUM; we divide by the true HW.
        x_flat = jnp.pad(x_flat, ((0, 0), (0, 0), (0, HW_pad - HW)))

    def _vmem_limit(*buffered_tile_bytes):
        need = sum(2 * int(b) for b in buffered_tile_bytes) + (4 << 20)
        return int(min(48 << 20, max(32 << 20, need)))

    in_tile_bytes = C_in * T_HW * 4
    out_tile_bytes = C_out * T_HW * 4
    w_bytes = C_out * C_in * 4

    # ---- Pass 1: spatial reduction + folded conv + bias + ReLU -> (N, C_out, 1).
    y = pl.pallas_call(
        partial(_reduce_conv_bn_relu_kernel, inv_hw=1.0 / float(HW)),
        out_shape=jax.ShapeDtypeStruct((N, C_out, 1), jnp.float32),
        grid_spec=pltpu.PrefetchScalarGridSpec(
            num_scalar_prefetch=0,
            grid=(N, n_hw),
            in_specs=[
                pl.BlockSpec((1, C_in, T_HW), lambda n, h: (n, 0, h)),
                pl.BlockSpec((C_out, C_in), lambda n, h: (0, 0)),
                pl.BlockSpec((C_out, 1), lambda n, h: (0, 0)),
            ],
            out_specs=pl.BlockSpec((1, C_out, 1), lambda n, h: (n, 0, 0)),
            scratch_shapes=[pltpu.VMEM((C_in, 1), jnp.float32)],
        ),
        compiler_params=pltpu.CompilerParams(
            dimension_semantics=("parallel", "arbitrary"),
            vmem_limit_bytes=_vmem_limit(in_tile_bytes, w_bytes),
        ),
    )(x_flat, w_folded, b_folded)

    # ---- Pass 2: broadcast (== bilinear align_corners=True upsample of a 1x1 map),
    #      written in lane-dense (1, C_out, T_HW) chunks; both grid axes independent.
    # TODO(synk): a bf16 output would halve HBM write traffic (v5e win) if downstream allows.
    out_flat = pl.pallas_call(
        _broadcast_kernel,
        out_shape=jax.ShapeDtypeStruct((N, C_out, HW_pad), jnp.float32),
        grid_spec=pltpu.PrefetchScalarGridSpec(
            num_scalar_prefetch=0,
            grid=(N, n_hw),
            in_specs=[pl.BlockSpec((1, C_out, 1), lambda n, h: (n, 0, 0))],
            out_specs=pl.BlockSpec((1, C_out, T_HW), lambda n, h: (n, 0, h)),
        ),
        compiler_params=pltpu.CompilerParams(
            dimension_semantics=("parallel", "parallel"),
            vmem_limit_bytes=_vmem_limit(out_tile_bytes),
        ),
    )(y)

    if HW_pad != HW:
        out_flat = out_flat[:, :, :HW]
    return out_flat.reshape(N, C_out, H, W)


def _reference(x_nchw, weight, gamma, beta, running_mean, running_var):
    # Pure-JAX reference for the same semantics.
    mean = jnp.mean(x_nchw, axis=(2, 3))                       # (N, C_in)
    y = mean @ weight.T                                        # (N, C_out)
    y = (y - running_mean) * jax.lax.rsqrt(running_var + BN_EPS) * gamma + beta
    y = jnp.maximum(y, 0.0)
    N, C_out = y.shape
    H, W = x_nchw.shape[2], x_nchw.shape[3]
    return jnp.broadcast_to(y[:, :, None, None], (N, C_out, H, W))


if __name__ == "__main__":
    key = jax.random.PRNGKey(0)
    k_x, k_w, k_g, k_b, k_m, k_v = jax.random.split(key, 6)

    N, C_in, C_out, H, W = 2, 4, 8, 16, 16

    x = jax.random.normal(k_x, (N, C_in, H, W), dtype=jnp.float32)
    weight = jax.random.normal(k_w, (C_out, C_in), dtype=jnp.float32) * 0.1
    gamma = 1.0 + 0.1 * jax.random.normal(k_g, (C_out,), dtype=jnp.float32)
    beta = 0.1 * jax.random.normal(k_b, (C_out,), dtype=jnp.float32)
    running_mean = 0.1 * jax.random.normal(k_m, (C_out,), dtype=jnp.float32)
    running_var = jnp.abs(1.0 + 0.1 * jax.random.normal(k_v, (C_out,), dtype=jnp.float32))

    out = aspp_pooling(x, weight, gamma, beta, running_mean, running_var)
    out = jax.block_until_ready(out)

    ref = _reference(x, weight, gamma, beta, running_mean, running_var)
    assert out.shape == (N, C_out, H, W)
    np.testing.assert_allclose(np.asarray(out), np.asarray(ref), rtol=1e-5, atol=1e-5)

    print("KERNEL_OK")
</pallas_src>

<mosaic_0001>
module attributes {stable_mosaic.version = 11 : i64} {
  func.func @_reduce_conv_bn_relu_kernel(%arg0: i32, %arg1: i32, %arg2: memref<1x4x256xf32, #tpu.memory_space<vmem>>, %arg3: memref<8x4xf32, #tpu.memory_space<vmem>>, %arg4: memref<8x1xf32, #tpu.memory_space<vmem>>, %arg5: memref<1x8x1xf32, #tpu.memory_space<vmem>>, %arg6: memref<4x1xf32, #tpu.memory_space<vmem>>) attributes {dimension_semantics = [#tpu.dimension_semantics<parallel>, #tpu.dimension_semantics<arbitrary>], iteration_bounds = array<i64: 2, 1>, scalar_prefetch = 0 : i64, scratch_operands = 1 : i64, tpu.core_type = #tpu.core_type<tc>, window_params = [{transform_indices = @transform_0, window_bounds = array<i64: 1, 4, 256>}, {pipeline_mode = #tpu.pipeline_mode<synchronous>, transform_indices = @transform_1, window_bounds = array<i64: 8, 4>}, {pipeline_mode = #tpu.pipeline_mode<synchronous>, transform_indices = @transform_2, window_bounds = array<i64: 8, 1>}, {transform_indices = @transform_3, window_bounds = array<i64: 1, 8, 1>}]} {
    %c0_i32 = arith.constant 0 : i32
    %0 = arith.cmpi eq, %arg1, %c0_i32 : i32
    %1 = arith.extui %0 : i1 to i32
    %c0_i32_0 = arith.constant 0 : i32
    %2 = arith.cmpi ne, %1, %c0_i32_0 : i32
    scf.if %2 {
      %cst_9 = arith.constant 0.000000e+00 : f32
      %13 = vector.broadcast %cst_9 : f32 to vector<4x1xf32>
      %c0_10 = arith.constant 0 : index
      %c0_11 = arith.constant 0 : index
      %14 = vector.load %arg6[%c0_10, %c0_11] : memref<4x1xf32, #tpu.memory_space<vmem>>, vector<4x1xf32>
      tpu.vector_store %arg6[%c0_10, %c0_11], %13 {strides = array<i32>} : memref<4x1xf32, #tpu.memory_space<vmem>>, vector<4x1xf32>,
    } else {
    }
    %c0 = arith.constant 0 : index
    %c0_1 = arith.constant 0 : index
    %c0_2 = arith.constant 0 : index
    %3 = vector.load %arg2[%c0, %c0_1, %c0_2] : memref<1x4x256xf32, #tpu.memory_space<vmem>>, vector<1x4x256xf32>
    %4 = vector.shape_cast %3 : vector<1x4x256xf32> to vector<4x256xf32>
    %c0_3 = arith.constant 0 : index
    %c0_4 = arith.constant 0 : index
    %5 = vector.load %arg6[%c0_3, %c0_4] : memref<4x1xf32, #tpu.memory_space<vmem>>, vector<4x1xf32>
    %cst = arith.constant dense<0.000000e+00> : vector<4xf32>
    %6 = vector.multi_reduction <add>, %4, %cst [1] : vector<4x256xf32> to vector<4xf32>
    %7 = vector.shape_cast %6 : vector<4xf32> to vector<4x1xf32>
    %8 = arith.addf %5, %7 : vector<4x1xf32>
    %c0_5 = arith.constant 0 : index
    %c0_6 = arith.constant 0 : index
    %9 = vector.load %arg6[%c0_5, %c0_6] : memref<4x1xf32, #tpu.memory_space<vmem>>, vector<4x1xf32>
    tpu.vector_store %arg6[%c0_5, %c0_6], %8 {strides = array<i32>} : memref<4x1xf32, #tpu.memory_space<vmem>>, vector<4x1xf32>,
    %c0_i32_7 = arith.constant 0 : i32
    %10 = arith.cmpi eq, %arg1, %c0_i32_7 : i32
    %11 = arith.extui %10 : i1 to i32
    %c0_i32_8 = arith.constant 0 : i32
    %12 = arith.cmpi ne, %11, %c0_i32_8 : i32
    scf.if %12 {
      %c0_9 = arith.constant 0 : index
      %c0_10 = arith.constant 0 : index
      %13 = vector.load %arg6[%c0_9, %c0_10] : memref<4x1xf32, #tpu.memory_space<vmem>>, vector<4x1xf32>
      %cst_11 = arith.constant 3.906250e-03 : f32
      %14 = vector.broadcast %cst_11 : f32 to vector<4x1xf32>
      %15 = arith.mulf %13, %14 : vector<4x1xf32>
      %c0_12 = arith.constant 0 : index
      %c0_13 = arith.constant 0 : index
      %16 = vector.load %arg3[%c0_12, %c0_13] : memref<8x4xf32, #tpu.memory_space<vmem>>, vector<8x4xf32>
      %cst_14 = arith.constant dense<0.000000e+00> : vector<8x1xf32>
      %17 = tpu.matmul %16, %15, %cst_14 {dimension_numbers = #tpu.dot_dimension_numbers<[1], [0], [0], [1], [0, 0, 1, 1], [], []>} : vector<8x4xf32>, vector<4x1xf32>, vector<8x1xf32> -> vector<8x1xf32>
      %c0_15 = arith.constant 0 : index
      %c0_16 = arith.constant 0 : index
      %18 = vector.load %arg4[%c0_15, %c0_16] : memref<8x1xf32, #tpu.memory_space<vmem>>, vector<8x1xf32>
      %19 = arith.addf %17, %18 : vector<8x1xf32>
      %cst_17 = arith.constant 0.000000e+00 : f32
      %20 = vector.broadcast %cst_17 : f32 to vector<8x1xf32>
      %21 = arith.maximumf %19, %20 : vector<8x1xf32>
      %c0_18 = arith.constant 0 : index
      %c0_19 = arith.constant 0 : index
      %c0_20 = arith.constant 0 : index
      %22 = vector.load %arg5[%c0_18, %c0_19, %c0_20] : memref<1x8x1xf32, #tpu.memory_space<vmem>>, vector<1x8x1xf32>
      %23 = vector.shape_cast %22 : vector<1x8x1xf32> to vector<8x1xf32>
      %24 = vector.shape_cast %21 : vector<8x1xf32> to vector<1x8x1xf32>
      tpu.vector_store %arg5[%c0_18, %c0_19, %c0_20], %24 {strides = array<i32>} : memref<1x8x1xf32, #tpu.memory_space<vmem>>, vector<1x8x1xf32>,
    } else {
    }
    return
  }
  func.func @transform_0(%arg0: i32, %arg1: i32) -> (i32, i32, i32) {
    %c0_i32 = arith.constant 0 : i32
    %c0_i32_0 = arith.constant 0 : i32
    return %arg0, %c0_i32, %arg1 : i32, i32, i32
  }
  func.func @transform_1(%arg0: i32, %arg1: i32) -> (i32, i32) {
    %c0_i32 = arith.constant 0 : i32
    %c0_i32_0 = arith.constant 0 : i32
    %c0_i32_1 = arith.constant 0 : i32
    return %c0_i32, %c0_i32_0 : i32, i32
  }
  func.func @transform_2(%arg0: i32, %arg1: i32) -> (i32, i32) {
    %c0_i32 = arith.constant 0 : i32
    %c0_i32_0 = arith.constant 0 : i32
    %c0_i32_1 = arith.constant 0 : i32
    return %c0_i32, %c0_i32_0 : i32, i32
  }
  func.func @transform_3(%arg0: i32, %arg1: i32) -> (i32, i32, i32) {
    %c0_i32 = arith.constant 0 : i32
    %c0_i32_0 = arith.constant 0 : i32
    %c0_i32_1 = arith.constant 0 : i32
    return %arg0, %c0_i32, %c0_i32_0 : i32, i32, i32
  }
}

</mosaic_0001>

<llo_original>
// kernel: tpu_custom_call.1
$region0: #{tpu_custom_call.1}
  #allocation0 [shape = 'u32[]', space=smem, size = 0x4, offset = 0x4, fixed_abs, tag = 'smem constant byte address 0x4 - core index']
  #allocation1 [shape = 'u32[144,128]{1,0:T(1,128)}', space=vmem, size = 0x12000, scoped, tag = 'internal scratch']
  #allocation2 [shape = 'f32[4,1]{1,0:T(4,128)}', space=vmem, size = 0x800, scoped, tag = 'scratch operand']
  %s0 = inlined_call_operand.vmem [shape: f32[2,4,256], index: 0, kind: input, shape index: {}]
  %s1 = inlined_call_operand.vmem [shape: f32[8,4], index: 1, kind: input, shape index: {}]
  %s2 = inlined_call_operand.vmem [shape: f32[8,1], index: 2, kind: input, shape index: {}]
  %s3 = inlined_call_operand.vmem [shape: f32[2,8,1], index: 3, kind: output, shape index: {}]
  %s4 = sld [smem:[#allocation0]]
  $region53: #{tpu_custom_call.1} parent=0
    _
  %s6 = ssub.s32 1, %s4
  %s7 = scalar_select 0, %s6, %s4
  loop: start=0, step=1, limit=4
  $region2: #{tpu_custom_call.1} parent=0 // loop_pre_header
    _
  $region3: #{tpu_custom_call.1} parent=0 // loop_header
    %s9 = sphi 0, %s13
    %p10 = scmp.ge.s32.totalorder %s9, 4
    %s16 = sphi 0, %s28
    %s17 = sphi 0, %s24
    %s18 = sphi 0, %s16
    %s19 = sphi 0, %s17
    %s20 = sphi 0, %s18
    %s21 = sphi 0, %s19
    %s33 = sphi 0, %s35
    %s36 = sphi 0, %s33
    %s37 = sphi 0, %s36
    %s53 = sphi 0, %s37
    %s57 = sphi 0, %s57
    %s59 = sphi 0, %s57
    %s60 = sphi 0, %s59
    %s74 = sphi 0, %s60
    %s78 = sphi 0, %s78
    %s80 = sphi 0, %s78
    %s81 = sphi 0, %s80
    %s95 = sphi 0, %s81
    %s101 = sphi 0, %s103
    %s104 = sphi 0, %s101
    %s105 = sphi 0, %s104
    %s121 = sphi 0, %s105
  $region4: #{tpu_custom_call.1} parent=0 // loop_header_branch
    %12 = sbr.rel (%p10) target = $region8
  $region5: #{tpu_custom_call.1} parent=0 // loop_body
    %s14 = ssub.s32 %s9, 1
    %s15 = ssub.s32 %s9, 2
    %s22 = sadd.s32 1, %s17
    %p23 = scmp.ge.s32.totalorder %s22, 1
    %s24 = scalar_select %p23, 0, %s22
    %s25 = sadd.s32 1, %s16
    %s26 = scalar_select %p23, %s25, %s16
    %p27 = scmp.ge.s32.totalorder %s26, 2
    %s28 = scalar_select %p27, 0, %s26
    %s29 = ssub.s32 %s16, %s28
    %s30 = ssub.s32 %s17, %s24
    %s31 = sor.u32 %s29, %s30
    %p32 = scmp.eq.s32.totalorder %s31, 0
    %s34 = sadd.s32 %s33, 1
    %s35 = scalar_select %p32, %s33, %s34
    %p38 = pneg %p32
    %p39 = scmp.eq.s32.totalorder %s9, 1
    %p40 = por %p38, %p39
    %p41 = scmp.ne.s32.totalorder %s33, %s36
    %p42 = scmp.eq.s32.totalorder %s9, 0
    %p43 = por %p41, %p42
    %p44 = scmp.ne.s32.totalorder %s33, %s36
    %p45 = scmp.eq.s32.totalorder %s14, 1
    %p46 = por %p44, %p45
    %p47 = scmp.ne.s32.totalorder %s36, %s37
    %p48 = scmp.eq.s32.totalorder %s14, 0
    %p49 = por %p47, %p48
    %p50 = scmp.ne.s32.totalorder %s36, %s37
    %p51 = scmp.eq.s32.totalorder %s15, 1
    %p52 = por %p50, %p51
    %p54 = scmp.ne.s32.totalorder %s37, %s53
    %p55 = scmp.eq.s32.totalorder %s15, 0
    %p56 = por %p54, %p55
    %s58 = sadd.s32 %s57, 1
    %p61 = scmp.eq.s32.totalorder %s9, 1
    %p62 = scmp.ne.s32.totalorder %s57, %s59
    %p63 = scmp.eq.s32.totalorder %s9, 0
    %p64 = por %p62, %p63
    %p65 = scmp.ne.s32.totalorder %s57, %s59
    %p66 = scmp.eq.s32.totalorder %s14, 1
    %p67 = por %p65, %p66
    %p68 = scmp.ne.s32.totalorder %s59, %s60
    %p69 = scmp.eq.s32.totalorder %s14, 0
    %p70 = por %p68, %p69
    %p71 = scmp.ne.s32.totalorder %s59, %s60
    %p72 = scmp.eq.s32.totalorder %s15, 1
    %p73 = por %p71, %p72
    %p75 = scmp.ne.s32.totalorder %s60, %s74
    %p76 = scmp.eq.s32.totalorder %s15, 0
    %p77 = por %p75, %p76
    %s79 = sadd.s32 %s78, 1
    %p82 = scmp.eq.s32.totalorder %s9, 1
    %p83 = scmp.ne.s32.totalorder %s78, %s80
    %p84 = scmp.eq.s32.totalorder %s9, 0
    %p85 = por %p83, %p84
    %p86 = scmp.ne.s32.totalorder %s78, %s80
    %p87 = scmp.eq.s32.totalorder %s14, 1
    %p88 = por %p86, %p87
    %p89 = scmp.ne.s32.totalorder %s80, %s81
    %p90 = scmp.eq.s32.totalorder %s14, 0
    %p91 = por %p89, %p90
    %p92 = scmp.ne.s32.totalorder %s80, %s81
    %p93 = scmp.eq.s32.totalorder %s15, 1
    %p94 = por %p92, %p93
    %p96 = scmp.ne.s32.totalorder %s81, %s95
    %p97 = scmp.eq.s32.totalorder %s15, 0
    %p98 = por %p96, %p97
    %s99 = ssub.s32 %s16, %s28
    %p100 = scmp.eq.s32.totalorder %s99, 0
    %s102 = sadd.s32 %s101, 1
    %s103 = scalar_select %p100, %s101, %s102
    %p106 = pneg %p100
    %p107 = scmp.eq.s32.totalorder %s9, 1
    %p108 = por %p106, %p107
    %p109 = scmp.ne.s32.totalorder %s101, %s104
    %p110 = scmp.eq.s32.totalorder %s9, 0
    %p111 = por %p109, %p110
    %p112 = scmp.ne.s32.totalorder %s101, %s104
    %p113 = scmp.eq.s32.totalorder %s14, 1
    %p114 = por %p112, %p113
    %p115 = scmp.ne.s32.totalorder %s104, %s105
    %p116 = scmp.eq.s32.totalorder %s14, 0
    %p117 = por %p115, %p116
    %p118 = scmp.ne.s32.totalorder %s104, %s105
    %p119 = scmp.eq.s32.totalorder %s15, 1
    %p120 = por %p118, %p119
    %p122 = scmp.ne.s32.totalorder %s105, %s121
    %p123 = scmp.eq.s32.totalorder %s15, 0
    %p124 = por %p122, %p123
    %p125 = scmp.le.s32.totalorder 1, %s9
    %p126 = scmp.lt.s32.totalorder %s9, 3
    %p127 = pnand %p125, %p126
    %p128 = pneg %p127
    // Predicated region
    $region9: #{tpu_custom_call.1} parent=5 // pred_check
      _
    $region10: #{tpu_custom_call.1} parent=5 // pred_check_branch
      %130 = sbr.rel (%p127) target = $region12
    $region11: #{tpu_custom_call.1} parent=5 // pred_region
      %s131 = ssub.s32 %s9, 1
      // Predicated region
      $region13: #{tpu_custom_call.1} parent=11 // pred_check
        %p132 = pneg %p70
      $region14: #{tpu_custom_call.1} parent=11 // pred_check_branch
        %134 = sbr.rel (%p132) target = $region16
      $region15: #{tpu_custom_call.1} parent=11 // pred_region
        _
      $region16: #{tpu_custom_call.1} parent=11 // pred_fallthru
        _
      // Predicated region
      $region17: #{tpu_custom_call.1} parent=11 // pred_check
        %p135 = pneg %p91
      $region18: #{tpu_custom_call.1} parent=11 // pred_check_branch
        %137 = sbr.rel (%p135) target = $region20
      $region19: #{tpu_custom_call.1} parent=11 // pred_region
        _
      $region20: #{tpu_custom_call.1} parent=11 // pred_fallthru
        _
    $region12: #{tpu_custom_call.1} parent=5 // pred_fallthru
      _
    %p138 = scmp.lt.s32.totalorder %s9, 2
    // Predicated region
    $region21: #{tpu_custom_call.1} parent=5 // pred_check
      %p139 = pneg %p138
    $region22: #{tpu_custom_call.1} parent=5 // pred_check_branch
      %141 = sbr.rel (%p139) target = $region24
    $region23: #{tpu_custom_call.1} parent=5 // pred_region
      // Predicated region
      $region25: #{tpu_custom_call.1} parent=23 // pred_check
        %p142 = pneg %p43
      $region26: #{tpu_custom_call.1} parent=23 // pred_check_branch
        %144 = sbr.rel (%p142) target = $region28
      $region27: #{tpu_custom_call.1} parent=23 // pred_region
        %s145 = smul.u32 2, %s17
        %p146 = scmp.lt.s32.totalorder %s16, 1
        %s147 = scalar_select %p146, %s16, 1
        %p148 = scmp.lt.s32.totalorder %s145, 1
        %s149 = scalar_select %p148, %s145, 1
        %s150 = smul.addr %s147, 2
        %s151 = sadd.s32 %s149, %s150
        %s152 = smul.addr %s151, 4
        %s153 = scalar_lea.vmem %s0, %s152
        %s154 = smul.u32 2, %s17
      $region28: #{tpu_custom_call.1} parent=23 // pred_fallthru
        _
    $region24: #{tpu_custom_call.1} parent=5 // pred_fallthru
      _
    %p155 = scmp.le.s32.totalorder 1, %s9
    %p156 = scmp.lt.s32.totalorder %s9, 3
    %p157 = pnand %p155, %p156
    %p158 = pneg %p157
    // Predicated region
    $region29: #{tpu_custom_call.1} parent=5 // pred_check
      _
    $region30: #{tpu_custom_call.1} parent=5 // pred_check_branch
      %160 = sbr.rel (%p157) target = $region32
    $region31: #{tpu_custom_call.1} parent=5 // pred_region
      %s161 = ssub.s32 %s9, 1
      %s162 = smul.u32 2, %s19
      %p163 = scmp.lt.s32.totalorder %s18, 1
      %s164 = scalar_select %p163, %s18, 1
      %p165 = scmp.lt.s32.totalorder %s162, 1
      %s166 = scalar_select %p165, %s162, 1
      %s167 = smul.addr %s164, 2
      %s168 = sadd.s32 %s166, %s167
      %s169 = smul.addr %s168, 4
      %s170 = scalar_lea.vmem %s0, %s169
      %p171 = pneg %p49
      %p172 = pneg %p46
      %p173 = pneg %p70
      %p174 = pneg %p67
      %p175 = pneg %p91
      %p176 = pneg %p88
      %p177 = pneg %p117
      %p178 = pneg %p114
      %p179 = scmp.lt.s32.totalorder %s18, 1
      %s180 = scalar_select %p179, %s18, 1
      %s181 = smul.addr %s180, 8
      %s182 = scalar_lea.vmem %s3, %s181
      %s183 = smul.u32 2, %s19
      %p184 = scmp.lt.s32.totalorder %s18, 1
      %s185 = scalar_select %p184, %s18, 1
      %p186 = scmp.lt.s32.totalorder %s183, 1
      %s187 = scalar_select %p186, %s183, 1
      %s188 = smul.addr %s185, 2
      %s189 = sadd.s32 %s187, %s188
      %s190 = smul.addr %s189, 4
      %s191 = scalar_lea.vmem %s0, %s190
      %s192 = smul.u32 2, %s19
      %p193 = scmp.lt.s32.totalorder %s18, 1
      %s194 = scalar_select %p193, %s18, 1
      %s195 = smul.addr %s194, 8
      %s196 = scalar_lea.vmem %s3, %s195
      %p197 = scmp.eq.s32.totalorder %s19, 0
      // Predicated region
      $region33: #{tpu_custom_call.1} parent=31 // pred_check
        %p198 = pneg %p197
      $region34: #{tpu_custom_call.1} parent=31 // pred_check_branch
        %200 = sbr.rel (%p198) target = $region36
      $region35: #{tpu_custom_call.1} parent=31 // pred_region
        %vm201 = vcmask 3072
        %202 = vst.msk [vmem:[#allocation2] sm:$0xf] %vm201, 0.0
      $region36: #{tpu_custom_call.1} parent=31 // pred_fallthru
        _
      %v203 = vld [vmem:[%s191] sm:$0xff]
      %v204 = vld [vmem:[#allocation2] sm:$0xf]
      %v206 = vcombine.high %v203, %v203
      %vm208 = vcmask 1043456
      %v209 = vsel %vm208, %v203, 0.0
      %v210 = vsel %vm208, %v206, 0.0
      %v211 = vadd.f32 %v209, %v210
      %212 = vadd.xlane.f32.xlu0 %v211
      %v213 = vpop.xlane.xlu0 %212
      %v214 = vadd.f32 %v204, %v213
      %vm215 = vcmask 3072
      %216 = vst.msk [vmem:[#allocation2] sm:$0xf] %vm215, %v214
      // Predicated region
      $region37: #{tpu_custom_call.1} parent=31 // pred_check
        %p217 = pneg %p197
      $region38: #{tpu_custom_call.1} parent=31 // pred_check_branch
        %219 = sbr.rel (%p217) target = $region40
      $region39: #{tpu_custom_call.1} parent=31 // pred_region
        %v220 = vld [vmem:[#allocation2] sm:$0xf]
        %v221 = vmul.f32 %v220, 0.00390625
        %v222 = vld [vmem:[%s1] sm:$0xff]
        %v223 = vld [vmem:[%s2] sm:$0xff]
        %vm224 = vcmask 31744
        %v226 = vsel %vm224, %v222, 0
        %v229 = vsel %vm208, %v221, 0
        %231 = vmatprep.subr.mxu0 0.0
        %232 = vmatpush1.msra.mxu0 %v229
        %233 = vmatprep.subr.mxu0 0.0
        %234 = vmatpush1.msra.mxu0 0.0
        %235 = vmatprep.subr.mxu0 0.0
        %236 = vmatpush1.msra.mxu0 0.0
        %237 = vmatprep.subr.mxu0 0.0
        %238 = vmatpush1.msra.mxu0 0.0
        %239 = vmatprep.subr.mxu0 0.0
        %240 = vmatpush1.msra.mxu0 0.0
        %241 = vmatprep.subr.mxu0 0.0
        %242 = vmatpush1.msra.mxu0 0.0
        %243 = vmatprep.subr.mxu0 0.0
        %244 = vmatpush1.msra.mxu0 0.0
        %245 = vmatprep.subr.mxu0 0.0
        %246 = vmatpush1.msra.mxu0 0.0
        %247 = vmatprep.subr.mxu0 0.0
        %248 = vmatpush1.msra.mxu0 0.0
        %249 = vmatprep.subr.mxu0 0.0
        %250 = vmatpush1.msra.mxu0 0.0
        %251 = vmatprep.subr.mxu0 0.0
        %252 = vmatpush1.msra.mxu0 0.0
        %253 = vmatprep.subr.mxu0 0.0
        %254 = vmatpush1.msra.mxu0 0.0
        %255 = vmatprep.subr.mxu0 0.0
        %256 = vmatpush1.msra.mxu0 0.0
        %257 = vmatprep.subr.mxu0 0.0
        %258 = vmatpush1.msra.mxu0 0.0
        %259 = vmatprep.subr.mxu0 0.0
        %260 = vmatpush1.msra.mxu0 0.0
        %261 = vmatprep.subr.mxu0 0.0
        %262 = vmatpush1.msra.mxu0 0.0
        %263 = vmatprep.subr.mxu0 0.0
        %264 = vmatpush1.msra.mxu0 0.0
        %265 = vmatprep.subr.mxu0 0.0
        %266 = vmatpush1.msra.mxu0 0.0
        %267 = vmatprep.subr.mxu0 0.0
        %268 = vmatpush1.msra.mxu0 0.0
        %269 = vmatprep.subr.mxu0 0.0
        %270 = vmatpush1.msra.mxu0 0.0
        %271 = vmatprep.subr.mxu0 0.0
        %272 = vmatpush1.msra.mxu0 0.0
        %273 = vmatprep.subr.mxu0 0.0
        %274 = vmatpush1.msra.mxu0 0.0
        %275 = vmatprep.subr.mxu0 0.0
        %276 = vmatpush1.msra.mxu0 0.0
        %277 = vmatprep.subr.mxu0 0.0
        %278 = vmatpush1.msra.mxu0 0.0
        %279 = vmatprep.subr.mxu0 0.0
        %280 = vmatpush1.msra.mxu0 0.0
        %281 = vmatprep.subr.mxu0 0.0
        %282 = vmatpush1.msra.mxu0 0.0
        %283 = vmatprep.subr.mxu0 0.0
        %284 = vmatpush1.msra.mxu0 0.0
        %285 = vmatprep.subr.mxu0 0.0
        %286 = vmatpush1.msra.mxu0 0.0
        %287 = vmatprep.subr.mxu0 0.0
        %288 = vmatpush1.msra.mxu0 0.0
        %289 = vmatprep.subr.mxu0 0.0
        %290 = vmatpush1.msra.mxu0 0.0
        %291 = vmatprep.subr.mxu0 0.0
        %292 = vmatpush1.msra.mxu0 0.0
        %293 = vmatprep.subr.mxu0 0.0
        %294 = vmatpush1.msra.mxu0 0.0
        %295 = vmatprep.mubr.f32.mxu0 0.0
        %296 = vmatmul.mubr.f32.gmra.mrb[0].mxu0 %v226
        %v297 = vpop.f32.mrb[0].mxu0
        %v298 = vadd.f32 %v223, %v297
        %v299 = vpop.f32.mrb[0].mxu0
        %300 = vdwg.mxu0
        %v301 = vmax.f32 %v298, 0.0
        %vm302 = vcmask 7168
        %303 = vst.msk [vmem:[%s196] sm:$0xff] %vm302, %v301
      $region40: #{tpu_custom_call.1} parent=31 // pred_fallthru
        _
      %p304 = scmp.lt.s32.totalorder %s18, 1
      %s305 = scalar_select %p304, %s18, 1
      %s306 = smul.addr %s305, 8
      %s307 = scalar_lea.vmem %s3, %s306
      // Predicated region
      $region41: #{tpu_custom_call.1} parent=31 // pred_check
        %p308 = pneg %p114
      $region42: #{tpu_custom_call.1} parent=31 // pred_check_branch
        %310 = sbr.rel (%p308) target = $region44
      $region43: #{tpu_custom_call.1} parent=31 // pred_region
        _
      $region44: #{tpu_custom_call.1} parent=31 // pred_fallthru
        _
    $region32: #{tpu_custom_call.1} parent=5 // pred_fallthru
      _
    %p311 = scmp.le.s32.totalorder 2, %s9
    // Predicated region
    $region45: #{tpu_custom_call.1} parent=5 // pred_check
      %p312 = pneg %p311
    $region46: #{tpu_custom_call.1} parent=5 // pred_check_branch
      %314 = sbr.rel (%p312) target = $region48
    $region47: #{tpu_custom_call.1} parent=5 // pred_region
      %s315 = ssub.s32 %s9, 2
      // Predicated region
      $region49: #{tpu_custom_call.1} parent=47 // pred_check
        %p316 = pneg %p120
      $region50: #{tpu_custom_call.1} parent=47 // pred_check_branch
        %318 = sbr.rel (%p316) target = $region52
      $region51: #{tpu_custom_call.1} parent=47 // pred_region
        %p319 = scmp.lt.s32.totalorder %s20, 1
        %s320 = scalar_select %p319, %s20, 1
        %s321 = smul.addr %s320, 8
        %s322 = scalar_lea.vmem %s3, %s321
      $region52: #{tpu_custom_call.1} parent=47 // pred_fallthru
        _
    $region48: #{tpu_custom_call.1} parent=5 // pred_fallthru
      _
  $region6: #{tpu_custom_call.1} parent=0 // loop_footer
    %s13 = sadd.s32 1, %s9
  $region7: #{tpu_custom_call.1} parent=0 // loop_footer_branch
    %8 = sbr.rel target = $region3
  $region8: #{tpu_custom_call.1} parent=0 // loop_exit
    _

</llo_original>
